<compile_context>
chip_gen: v5e
topology: v5e:2x2
jax: 0.10.0
libtpu: 0.0.40
codegen_flags: <defaults>
</compile_context>

<pallas_src>
import functools

import jax
import jax.numpy as jnp
from jax.experimental import pallas as pl
from jax.experimental.pallas import tpu as pltpu

LAMBDA_GLOBAL = 0.01   # lambda_global from the module default
LAMBDA1 = 1.0          # intra-island pairwise-cosine weight of IslandLoss


def _ce_island_kernel(logits_ref, labels_ref, feats_ref, centers_ref, out_ref,
                      *, n_total, lambda_global, lambda1):
    step = pl.program_id(0)
    tn, c = logits_ref.shape

    # Valid-row mask: the last (partial) block may contain garbage rows — the wrapper
    # no longer pads, so mask the *loaded* values before max/exp and the matmuls.
    row_ids = step * tn + jax.lax.broadcasted_iota(jnp.int32, (tn, 1), 0)
    valid = row_ids < n_total                                               # (TN, 1) bool

    logits = jnp.where(valid, logits_ref[...].astype(jnp.float32), 0.0)    # (TN, C)
    feats = jnp.where(valid, feats_ref[...].astype(jnp.float32), 0.0)      # (TN, D)
    labels = jnp.where(valid, labels_ref[...], 0)                          # (TN, 1) int32
    centers = centers_ref[...]                                             # (K, D) f32 (pre-cast)

    # One shared one-hot for both the CE logit gather and the center gather (K == C).
    # TODO(synk): nn.CrossEntropyLoss ignore_index (default -100) is not implemented;
    # all labels are assumed valid in [0, C).
    class_ids = jax.lax.broadcasted_iota(jnp.int32, (tn, c), 1)
    onehot = (class_ids == labels).astype(jnp.float32)                     # (TN, C)

    # ---- cross-entropy, per-row ----
    # TODO(synk): for vocab-scale C add a class-chunk grid axis with an online LSE so
    # the logits block stays within VMEM (mandatory on v7x's 64 MiB); C here is small.
    m = jnp.max(logits, axis=-1, keepdims=True)                            # (TN, 1)
    lse = m + jnp.log(jnp.sum(jnp.exp(logits - m), axis=-1, keepdims=True))
    logit_y = jnp.sum(logits * onehot, axis=-1, keepdims=True)
    ce_row = lse - logit_y                                                  # (TN, 1)

    # ---- center loss, per-row (one-hot gather on the MXU) ----
    # TODO(synk): at very large K replace the O(TN*K*D) one-hot matmul with a true
    # gather of c_{y_i}; at modest K the matmul rides free under the MXU slot.
    cent_sel = jnp.dot(onehot, centers, preferred_element_type=jnp.float32)  # (TN, D)
    diff = feats - cent_sel
    cl_row = jnp.sum(diff * diff, axis=-1, keepdims=True)                   # (TN, 1)

    # ---- per-step partial (already /N and lambda-weighted), stored lane-dense ----
    validf = valid.astype(jnp.float32)
    inv_n = 1.0 / float(n_total)
    partial = jnp.sum((ce_row + (lambda_global * 0.5) * cl_row) * validf) * inv_n

    sub = jax.lax.broadcasted_iota(jnp.int32, (1, 8, 128), 1)
    lane = jax.lax.broadcasted_iota(jnp.int32, (1, 8, 128), 2)
    mask0 = (sub == 0) & (lane == 0)
    out_ref[...] = jnp.where(mask0, partial, 0.0)

    # ---- batch-independent K x K pairwise (cos + 1) term: computed exactly once ----
    @pl.when(step == 0)
    def _pair():
        k = centers.shape[0]
        cn = centers * jax.lax.rsqrt(
            jnp.sum(centers * centers, axis=-1, keepdims=True) + 1e-12)
        sim = jax.lax.dot_general(cn, cn, (((1,), (1,)), ((), ())),
                                  preferred_element_type=jnp.float32)       # (K, K)
        # sum_{j != k} (sim + 1) = sum(sim) - trace(sim) + (k^2 - k), with diag(sim) == 1.
        pair_term = jnp.sum(sim) + float(k * k - 2 * k)
        out_ref[...] = jnp.where(
            mask0, partial + lambda_global * lambda1 * pair_term, 0.0)


def _round_up(x, m):
    return ((x + m - 1) // m) * m


def _pick_tile_n(n, c, d, k, logits_isz, feats_isz, vmem_limit_bytes):
    # Double-buffered input blocks + resident centers + in-kernel f32 temporaries
    # (f32 logits, one-hot, exp, f32 feats, diff), against ~75% of the VMEM limit.
    per_row = (2 * c * logits_isz + 2 * d * feats_isz + 2 * 4
               + 3 * c * 4 + 2 * d * 4)
    fixed = 2 * k * d * 4 + 2 * 8 * 128 * 4
    budget = int(vmem_limit_bytes * 0.75) - fixed
    tile_n = budget // max(per_row, 1)
    tile_n = max(8, min(tile_n, 2048))        # step-overhead-bound below ~1-2K rows
    tile_n = min(tile_n, _round_up(n, 8))     # never larger than the (8-rounded) batch
    return (tile_n // 8) * 8


def ce_island_criterion(logits, labels, features, centers,
                        lambda_global=LAMBDA_GLOBAL, lambda1=LAMBDA1,
                        tile_n=None, vmem_limit_bytes=32 * 1024 * 1024):
    """logits (N,C), labels (N,) int, features (N,D), centers (K,D); K == C."""
    n, c = logits.shape
    k, d = centers.shape
    assert k == c, "class centers must match the logit class count"
    assert features.shape == (n, d)

    if tile_n is None:
        tile_n = _pick_tile_n(n, c, d, k, jnp.dtype(logits.dtype).itemsize,
                              jnp.dtype(features.dtype).itemsize, vmem_limit_bytes)
    else:
        tile_n = max(8, (min(int(tile_n), _round_up(n, 8)) // 8) * 8)

    n_steps = -(-n // tile_n)      # ragged tail handled in-kernel (no jnp.pad HBM copies)

    labels2d = labels.reshape(-1, 1).astype(jnp.int32)
    centers_f32 = centers.astype(jnp.float32)   # hoisted cast: tiny and reused every step
    # TODO(synk): centers could be single-buffered (pipeline_mode=pl.Buffered(1)) since
    # its index_map is constant; kept default-buffered here for maximally portable lowering.

    kernel = functools.partial(_ce_island_kernel, n_total=n,
                               lambda_global=float(lambda_global),
                               lambda1=float(lambda1))

    cost = pl.CostEstimate(
        flops=int(n * (2 * c * d + 8 * c + 6 * d) + 2 * k * k * d),
        transcendentals=int(n * c + n + k),
        bytes_accessed=int(n * c * jnp.dtype(logits.dtype).itemsize
                           + n * d * jnp.dtype(features.dtype).itemsize
                           + n * 4 + k * d * 4 + n_steps * 8 * 128 * 4),
    )

    partials = pl.pallas_call(
        kernel,
        out_shape=jax.ShapeDtypeStruct((n_steps, 8, 128), jnp.float32),
        grid_spec=pltpu.PrefetchScalarGridSpec(
            num_scalar_prefetch=0,
            grid=(n_steps,),
            in_specs=[
                pl.BlockSpec((tile_n, c), lambda i: (i, 0)),   # logits
                pl.BlockSpec((tile_n, 1), lambda i: (i, 0)),   # labels
                pl.BlockSpec((tile_n, d), lambda i: (i, 0)),   # features
                pl.BlockSpec((k, d), lambda i: (0, 0)),        # centers (VMEM-resident)
            ],
            out_specs=pl.BlockSpec((1, 8, 128), lambda i: (i, 0, 0)),
        ),
        compiler_params=pltpu.CompilerParams(
            # Independent per-step partials: batch axis can be sharded across
            # TensorCores on v7x; no effect (and no cost) on v5e/v6e.
            dimension_semantics=("parallel",),
            vmem_limit_bytes=int(vmem_limit_bytes),
        ),
        cost_estimate=cost,
    )(logits, labels2d, features, centers_f32)

    # Tiny final reduction of the per-step partials (n_steps x 8 x 128 f32).
    return jnp.sum(partials)


def _reference(logits, labels, features, centers,
               lambda_global=LAMBDA_GLOBAL, lambda1=LAMBDA1):
    # pure-JAX reference for correctness check
    logits = logits.astype(jnp.float32)
    lse = jax.scipy.special.logsumexp(logits, axis=-1)
    ce = jnp.mean(lse - logits[jnp.arange(logits.shape[0]), labels])
    diff = features.astype(jnp.float32) - centers.astype(jnp.float32)[labels]
    center_loss = 0.5 * jnp.mean(jnp.sum(diff * diff, axis=-1))
    cn = centers / (jnp.linalg.norm(centers, axis=-1, keepdims=True) + 1e-12)
    sim = cn @ cn.T
    kk = centers.shape[0]
    pair = jnp.sum((sim + 1.0) * (1.0 - jnp.eye(kk)))
    return ce + lambda_global * (center_loss + lambda1 * pair)


if __name__ == "__main__":
    key = jax.random.PRNGKey(0)
    k_logits, k_feats, k_centers, k_labels = jax.random.split(key, 4)

    N, C, D = 60, 10, 32          # batch, num_classes (== num centers), feature dim
    logits = jax.random.normal(k_logits, (N, C), dtype=jnp.float32)
    features = jax.random.normal(k_feats, (N, D), dtype=jnp.float32)
    centers = jax.random.normal(k_centers, (C, D), dtype=jnp.float32) * 0.1
    labels = jax.random.randint(k_labels, (N,), 0, C, dtype=jnp.int32)

    ref = _reference(logits, labels, features, centers)

    # tile_n=16 -> 4 grid steps with a ragged tail (60 = 3*16 + 12): exercises the
    # un-padded partial-block masking and multi-step partial-sum path.
    total = ce_island_criterion(logits, labels, features, centers, tile_n=16)
    total = jax.block_until_ready(total)
    assert jnp.allclose(total, ref, rtol=1e-4, atol=1e-4), (float(total), float(ref))

    # VMEM-budget-driven auto tile (single step at this size).
    total_auto = jax.block_until_ready(
        ce_island_criterion(logits, labels, features, centers))
    assert jnp.allclose(total_auto, ref, rtol=1e-4, atol=1e-4), (float(total_auto), float(ref))

    print("KERNEL_OK")
</pallas_src>

<mosaic_0001>
module attributes {stable_mosaic.version = 11 : i64} {
  func.func @_ce_island_kernel(%arg0: i32, %arg1: memref<16x10xf32, #tpu.memory_space<vmem>>, %arg2: memref<16x1xi32, #tpu.memory_space<vmem>>, %arg3: memref<16x32xf32, #tpu.memory_space<vmem>>, %arg4: memref<10x32xf32, #tpu.memory_space<vmem>>, %arg5: memref<1x8x128xf32, #tpu.memory_space<vmem>>) attributes {dimension_semantics = [#tpu.dimension_semantics<parallel>], iteration_bounds = array<i64: 4>, scalar_prefetch = 0 : i64, scratch_operands = 0 : i64, tpu.core_type = #tpu.core_type<tc>, window_params = [{transform_indices = @transform_0, window_bounds = array<i64: 16, 10>}, {transform_indices = @transform_1, window_bounds = array<i64: 16, 1>}, {transform_indices = @transform_2, window_bounds = array<i64: 16, 32>}, {pipeline_mode = #tpu.pipeline_mode<synchronous>, transform_indices = @transform_3, window_bounds = array<i64: 10, 32>}, {transform_indices = @transform_4, window_bounds = array<i64: 1, 8, 128>}]} {
    %c16_i32 = arith.constant 16 : i32
    %0 = arith.muli %arg0, %c16_i32 : i32
    %1 = tpu.iota {dimensions = array<i32: 0>} : vector<16x1xi32>
    %2 = vector.broadcast %0 : i32 to vector<16x1xi32>
    %3 = arith.addi %2, %1 : vector<16x1xi32>
    %c60_i32 = arith.constant 60 : i32
    %4 = vector.broadcast %c60_i32 : i32 to vector<16x1xi32>
    %5 = arith.cmpi slt, %3, %4 : vector<16x1xi32>
    %c0 = arith.constant 0 : index
    %c0_0 = arith.constant 0 : index
    %6 = vector.load %arg1[%c0, %c0_0] : memref<16x10xf32, #tpu.memory_space<vmem>>, vector<16x10xf32>
    %cst = arith.constant 0.000000e+00 : f32
    %7 = vector.shape_cast %5 : vector<16x1xi1> to vector<16x1xi1>
    %8 = vector.broadcast %7 : vector<16x1xi1> to vector<16x10xi1>
    %9 = vector.broadcast %cst : f32 to vector<16x10xf32>
    %10 = arith.select %8, %6, %9 : vector<16x10xi1>, vector<16x10xf32>
    %c0_1 = arith.constant 0 : index
    %c0_2 = arith.constant 0 : index
    %11 = vector.load %arg3[%c0_1, %c0_2] : memref<16x32xf32, #tpu.memory_space<vmem>>, vector<16x32xf32>
    %cst_3 = arith.constant 0.000000e+00 : f32
    %12 = vector.shape_cast %5 : vector<16x1xi1> to vector<16x1xi1>
    %13 = vector.broadcast %12 : vector<16x1xi1> to vector<16x32xi1>
    %14 = vector.broadcast %cst_3 : f32 to vector<16x32xf32>
    %15 = arith.select %13, %11, %14 : vector<16x32xi1>, vector<16x32xf32>
    %c0_4 = arith.constant 0 : index
    %c0_5 = arith.constant 0 : index
    %16 = vector.load %arg2[%c0_4, %c0_5] : memref<16x1xi32, #tpu.memory_space<vmem>>, vector<16x1xi32>
    %c0_i32 = arith.constant 0 : i32
    %17 = vector.broadcast %c0_i32 : i32 to vector<16x1xi32>
    %18 = arith.select %5, %16, %17 : vector<16x1xi1>, vector<16x1xi32>
    %c0_6 = arith.constant 0 : index
    %c0_7 = arith.constant 0 : index
    %19 = vector.load %arg4[%c0_6, %c0_7] : memref<10x32xf32, #tpu.memory_space<vmem>>, vector<10x32xf32>
    %20 = tpu.iota {dimensions = array<i32: 1>} : vector<16x10xi32>
    %21 = vector.broadcast %18 : vector<16x1xi32> to vector<16x10xi32>
    %22 = arith.cmpi eq, %20, %21 : vector<16x10xi32>
    %23 = arith.extui %22 : vector<16x10xi1> to vector<16x10xi32>
    %24 = arith.sitofp %23 : vector<16x10xi32> to vector<16x10xf32>
    %cst_8 = arith.constant dense<0xFF800000> : vector<16xf32>
    %25 = vector.multi_reduction <maximumf>, %10, %cst_8 [1] : vector<16x10xf32> to vector<16xf32>
    %26 = vector.shape_cast %25 : vector<16xf32> to vector<16x1xf32>
    %27 = vector.broadcast %26 : vector<16x1xf32> to vector<16x10xf32>
    %28 = arith.subf %10, %27 : vector<16x10xf32>
    %29 = math.exp %28 : vector<16x10xf32>
    %cst_9 = arith.constant dense<0.000000e+00> : vector<16xf32>
    %30 = vector.multi_reduction <add>, %29, %cst_9 [1] : vector<16x10xf32> to vector<16xf32>
    %31 = vector.shape_cast %30 : vector<16xf32> to vector<16x1xf32>
    %32 = math.log %31 : vector<16x1xf32>
    %33 = arith.addf %26, %32 : vector<16x1xf32>
    %34 = arith.mulf %10, %24 : vector<16x10xf32>
    %cst_10 = arith.constant dense<0.000000e+00> : vector<16xf32>
    %35 = vector.multi_reduction <add>, %34, %cst_10 [1] : vector<16x10xf32> to vector<16xf32>
    %36 = vector.shape_cast %35 : vector<16xf32> to vector<16x1xf32>
    %37 = arith.subf %33, %36 : vector<16x1xf32>
    %cst_11 = arith.constant dense<0.000000e+00> : vector<16x32xf32>
    %38 = tpu.matmul %24, %19, %cst_11 {dimension_numbers = #tpu.dot_dimension_numbers<[1], [0], [0], [1], [0, 0, 1, 1], [], []>} : vector<16x10xf32>, vector<10x32xf32>, vector<16x32xf32> -> vector<16x32xf32>
    %39 = arith.subf %15, %38 : vector<16x32xf32>
    %40 = arith.mulf %39, %39 : vector<16x32xf32>
    %cst_12 = arith.constant dense<0.000000e+00> : vector<16xf32>
    %41 = vector.multi_reduction <add>, %40, %cst_12 [1] : vector<16x32xf32> to vector<16xf32>
    %42 = vector.shape_cast %41 : vector<16xf32> to vector<16x1xf32>
    %43 = arith.extui %5 : vector<16x1xi1> to vector<16x1xi32>
    %44 = arith.sitofp %43 : vector<16x1xi32> to vector<16x1xf32>
    %cst_13 = arith.constant 5.000000e-03 : f32
    %45 = vector.broadcast %cst_13 : f32 to vector<16x1xf32>
    %46 = arith.mulf %45, %42 : vector<16x1xf32>
    %47 = arith.addf %37, %46 : vector<16x1xf32>
    %48 = arith.mulf %47, %44 : vector<16x1xf32>
    %49 = vector.shape_cast %48 : vector<16x1xf32> to vector<1x16x1xf32>
    %cst_14 = arith.constant dense<0.000000e+00> : vector<1xf32>
    %50 = vector.multi_reduction <add>, %49, %cst_14 [1, 2] : vector<1x16x1xf32> to vector<1xf32>
    %51 = vector.shape_cast %50 : vector<1xf32> to vector<1x1x1xf32>
    %52 = vector.extract %51[0, 0, 0] : f32 from vector<1x1x1xf32>
    %cst_15 = arith.constant 0.0166666675 : f32
    %53 = arith.mulf %52, %cst_15 : f32
    %54 = tpu.iota {dimensions = array<i32: 1>} : vector<1x8x128xi32>
    %55 = tpu.iota {dimensions = array<i32: 2>} : vector<1x8x128xi32>
    %c0_i32_16 = arith.constant 0 : i32
    %56 = vector.broadcast %c0_i32_16 : i32 to vector<1x8x128xi32>
    %57 = arith.cmpi eq, %54, %56 : vector<1x8x128xi32>
    %c0_i32_17 = arith.constant 0 : i32
    %58 = vector.broadcast %c0_i32_17 : i32 to vector<1x8x128xi32>
    %59 = arith.cmpi eq, %55, %58 : vector<1x8x128xi32>
    %60 = arith.andi %57, %59 : vector<1x8x128xi1>
    %cst_18 = arith.constant 0.000000e+00 : f32
    %61 = vector.broadcast %53 : f32 to vector<1x8x128xf32>
    %62 = vector.broadcast %cst_18 : f32 to vector<1x8x128xf32>
    %63 = arith.select %60, %61, %62 : vector<1x8x128xi1>, vector<1x8x128xf32>
    %c0_19 = arith.constant 0 : index
    %c0_20 = arith.constant 0 : index
    %c0_21 = arith.constant 0 : index
    %64 = vector.load %arg5[%c0_19, %c0_20, %c0_21] : memref<1x8x128xf32, #tpu.memory_space<vmem>>, vector<1x8x128xf32>
    tpu.vector_store %arg5[%c0_19, %c0_20, %c0_21], %63 {strides = array<i32>} : memref<1x8x128xf32, #tpu.memory_space<vmem>>, vector<1x8x128xf32>,
    %c0_i32_22 = arith.constant 0 : i32
    %65 = arith.cmpi eq, %arg0, %c0_i32_22 : i32
    %66 = arith.extui %65 : i1 to i32
    %c0_i32_23 = arith.constant 0 : i32
    %67 = arith.cmpi ne, %66, %c0_i32_23 : i32
    scf.if %67 {
      %68 = arith.mulf %19, %19 : vector<10x32xf32>
      %cst_24 = arith.constant dense<0.000000e+00> : vector<10xf32>
      %69 = vector.multi_reduction <add>, %68, %cst_24 [1] : vector<10x32xf32> to vector<10xf32>
      %70 = vector.shape_cast %69 : vector<10xf32> to vector<10x1xf32>
      %cst_25 = arith.constant 9.99999996E-13 : f32
      %71 = vector.broadcast %cst_25 : f32 to vector<10x1xf32>
      %72 = arith.addf %70, %71 : vector<10x1xf32>
      %73 = math.rsqrt %72 : vector<10x1xf32>
      %74 = vector.broadcast %73 : vector<10x1xf32> to vector<10x32xf32>
      %75 = arith.mulf %19, %74 : vector<10x32xf32>
      %cst_26 = arith.constant dense<0.000000e+00> : vector<10x10xf32>
      %76 = tpu.matmul %75, %75, %cst_26 {dimension_numbers = #tpu.dot_dimension_numbers<[1], [1], [0], [0], [0, 0, 1, 0], [], []>} : vector<10x32xf32>, vector<10x32xf32>, vector<10x10xf32> -> vector<10x10xf32>
      %77 = vector.shape_cast %76 : vector<10x10xf32> to vector<1x10x10xf32>
      %cst_27 = arith.constant dense<0.000000e+00> : vector<1xf32>
      %78 = vector.multi_reduction <add>, %77, %cst_27 [1, 2] : vector<1x10x10xf32> to vector<1xf32>
      %79 = vector.shape_cast %78 : vector<1xf32> to vector<1x1x1xf32>
      %80 = vector.extract %79[0, 0, 0] : f32 from vector<1x1x1xf32>
      %cst_28 = arith.constant 8.000000e+01 : f32
      %81 = arith.addf %80, %cst_28 : f32
      %cst_29 = arith.constant 0.00999999977 : f32
      %82 = arith.mulf %cst_29, %81 : f32
      %83 = arith.addf %53, %82 : f32
      %cst_30 = arith.constant 0.000000e+00 : f32
      %84 = vector.broadcast %83 : f32 to vector<1x8x128xf32>
      %85 = vector.broadcast %cst_30 : f32 to vector<1x8x128xf32>
      %86 = arith.select %60, %84, %85 : vector<1x8x128xi1>, vector<1x8x128xf32>
      %c0_31 = arith.constant 0 : index
      %c0_32 = arith.constant 0 : index
      %c0_33 = arith.constant 0 : index
      %87 = vector.load %arg5[%c0_31, %c0_32, %c0_33] : memref<1x8x128xf32, #tpu.memory_space<vmem>>, vector<1x8x128xf32>
      tpu.vector_store %arg5[%c0_31, %c0_32, %c0_33], %86 {strides = array<i32>} : memref<1x8x128xf32, #tpu.memory_space<vmem>>, vector<1x8x128xf32>,
    } else {
    }
    return
  }
  func.func @transform_0(%arg0: i32) -> (i32, i32) {
    %c0_i32 = arith.constant 0 : i32
    %c0_i32_0 = arith.constant 0 : i32
    return %arg0, %c0_i32 : i32, i32
  }
  func.func @transform_1(%arg0: i32) -> (i32, i32) {
    %c0_i32 = arith.constant 0 : i32
    %c0_i32_0 = arith.constant 0 : i32
    return %arg0, %c0_i32 : i32, i32
  }
  func.func @transform_2(%arg0: i32) -> (i32, i32) {
    %c0_i32 = arith.constant 0 : i32
    %c0_i32_0 = arith.constant 0 : i32
    return %arg0, %c0_i32 : i32, i32
  }
  func.func @transform_3(%arg0: i32) -> (i32, i32) {
    %c0_i32 = arith.constant 0 : i32
    %c0_i32_0 = arith.constant 0 : i32
    %c0_i32_1 = arith.constant 0 : i32
    return %c0_i32, %c0_i32_0 : i32, i32
  }
  func.func @transform_4(%arg0: i32) -> (i32, i32, i32) {
    %c0_i32 = arith.constant 0 : i32
    %c0_i32_0 = arith.constant 0 : i32
    %c0_i32_1 = arith.constant 0 : i32
    return %arg0, %c0_i32, %c0_i32_0 : i32, i32, i32
  }
}

</mosaic_0001>

<llo_original>
// kernel: tpu_custom_call.1
$region0: #{tpu_custom_call.1}
  #allocation0 [shape = 'u32[]', space=smem, size = 0x4, offset = 0x4, fixed_abs, tag = 'smem constant byte address 0x4 - core index']
  #allocation1 [shape = 'u32[72,128]{1,0:T(1,128)}', space=vmem, size = 0x9000, scoped, tag = 'internal scratch']
  %s0 = inlined_call_operand.vmem [shape: f32[60,10], index: 0, kind: input, shape index: {}]
  %s1 = inlined_call_operand.vmem [shape: s32[60,1], index: 1, kind: input, shape index: {}]
  %s2 = inlined_call_operand.vmem [shape: f32[60,32], index: 2, kind: input, shape index: {}]
  %s3 = inlined_call_operand.vmem [shape: f32[10,32], index: 3, kind: input, shape index: {}]
  %s4 = inlined_call_operand.hbm [shape: f32[4,8,128], index: 4, kind: output, shape index: {}]
  %s5 = sld [smem:[#allocation0]]
  $region53: #{tpu_custom_call.1} parent=0
    _
  %s7 = ssub.s32 1, %s5
  %s8 = scalar_select 0, %s7, %s5
  $region1: #{tpu_custom_call.1} parent=0
    #allocation2 [shape = 'u8[8192]{0}', space=vmem, size = 0x2000, scoped, tag = 'output window, operand 0']
    #allocation3 [shape = 's32[2]{0}', space=sflag, size = 0x8, scoped, tag = 'scoped memory for tpu_custom_call.1']
    %9 = vsyncpa [#allocation3], 0
    %s10 = scalar_lea.sflag [#allocation3], 1
    %11 = vsyncpa %s10, 0
    loop: start=0, step=1, limit=6
    $region2: #{tpu_custom_call.1} parent=1 // loop_pre_header
      _
    $region3: #{tpu_custom_call.1} parent=1 // loop_header
      %s13 = sphi 0, %s17
      %p14 = scmp.ge.s32.totalorder %s13, 6
      %s23 = sphi 0, %s25
      %s26 = sphi 0, %s23
      %s27 = sphi 0, %s26
      %s43 = sphi 0, %s27
      %s49 = sphi 0, %s51
      %s52 = sphi 0, %s49
      %s53 = sphi 0, %s52
      %s69 = sphi 0, %s53
      %s75 = sphi 0, %s77
      %s78 = sphi 0, %s75
      %s79 = sphi 0, %s78
      %s95 = sphi 0, %s79
      %s99 = sphi 0, %s99
      %s101 = sphi 0, %s99
      %s102 = sphi 0, %s101
      %s116 = sphi 0, %s102
      %s122 = sphi 0, %s124
      %s125 = sphi 0, %s122
      %s126 = sphi 0, %s125
      %s142 = sphi 0, %s126
    $region4: #{tpu_custom_call.1} parent=1 // loop_header_branch
      %16 = sbr.rel (%p14) target = $region8
    $region5: #{tpu_custom_call.1} parent=1 // loop_body
      %s18 = ssub.s32 %s13, 1
      %s19 = ssub.s32 %s13, 2
      %s20 = sadd.s32 %s13, 1
      %s21 = ssub.s32 %s13, %s20
      %p22 = scmp.eq.s32.totalorder %s21, 0
      %s24 = sadd.s32 %s23, 1
      %s25 = scalar_select %p22, %s23, %s24
      %p28 = pneg %p22
      %p29 = scmp.eq.s32.totalorder %s13, 3
      %p30 = por %p28, %p29
      %p31 = scmp.ne.s32.totalorder %s23, %s26
      %p32 = scmp.eq.s32.totalorder %s13, 0
      %p33 = por %p31, %p32
      %p34 = scmp.ne.s32.totalorder %s23, %s26
      %p35 = scmp.eq.s32.totalorder %s18, 3
      %p36 = por %p34, %p35
      %p37 = scmp.ne.s32.totalorder %s26, %s27
      %p38 = scmp.eq.s32.totalorder %s18, 0
      %p39 = por %p37, %p38
      %p40 = scmp.ne.s32.totalorder %s26, %s27
      %p41 = scmp.eq.s32.totalorder %s19, 3
      %p42 = por %p40, %p41
      %p44 = scmp.ne.s32.totalorder %s27, %s43
      %p45 = scmp.eq.s32.totalorder %s19, 0
      %p46 = por %p44, %p45
      %s47 = ssub.s32 %s13, %s20
      %p48 = scmp.eq.s32.totalorder %s47, 0
      %s50 = sadd.s32 %s49, 1
      %s51 = scalar_select %p48, %s49, %s50
      %p54 = pneg %p48
      %p55 = scmp.eq.s32.totalorder %s13, 3
      %p56 = por %p54, %p55
      %p57 = scmp.ne.s32.totalorder %s49, %s52
      %p58 = scmp.eq.s32.totalorder %s13, 0
      %p59 = por %p57, %p58
      %p60 = scmp.ne.s32.totalorder %s49, %s52
      %p61 = scmp.eq.s32.totalorder %s18, 3
      %p62 = por %p60, %p61
      %p63 = scmp.ne.s32.totalorder %s52, %s53
      %p64 = scmp.eq.s32.totalorder %s18, 0
      %p65 = por %p63, %p64
      %p66 = scmp.ne.s32.totalorder %s52, %s53
      %p67 = scmp.eq.s32.totalorder %s19, 3
      %p68 = por %p66, %p67
      %p70 = scmp.ne.s32.totalorder %s53, %s69
      %p71 = scmp.eq.s32.totalorder %s19, 0
      %p72 = por %p70, %p71
      %s73 = ssub.s32 %s13, %s20
      %p74 = scmp.eq.s32.totalorder %s73, 0
      %s76 = sadd.s32 %s75, 1
      %s77 = scalar_select %p74, %s75, %s76
      %p80 = pneg %p74
      %p81 = scmp.eq.s32.totalorder %s13, 3
      %p82 = por %p80, %p81
      %p83 = scmp.ne.s32.totalorder %s75, %s78
      %p84 = scmp.eq.s32.totalorder %s13, 0
      %p85 = por %p83, %p84
      %p86 = scmp.ne.s32.totalorder %s75, %s78
      %p87 = scmp.eq.s32.totalorder %s18, 3
      %p88 = por %p86, %p87
      %p89 = scmp.ne.s32.totalorder %s78, %s79
      %p90 = scmp.eq.s32.totalorder %s18, 0
      %p91 = por %p89, %p90
      %p92 = scmp.ne.s32.totalorder %s78, %s79
      %p93 = scmp.eq.s32.totalorder %s19, 3
      %p94 = por %p92, %p93
      %p96 = scmp.ne.s32.totalorder %s79, %s95
      %p97 = scmp.eq.s32.totalorder %s19, 0
      %p98 = por %p96, %p97
      %s100 = sadd.s32 %s99, 1
      %p103 = scmp.eq.s32.totalorder %s13, 3
      %p104 = scmp.ne.s32.totalorder %s99, %s101
      %p105 = scmp.eq.s32.totalorder %s13, 0
      %p106 = por %p104, %p105
      %p107 = scmp.ne.s32.totalorder %s99, %s101
      %p108 = scmp.eq.s32.totalorder %s18, 3
      %p109 = por %p107, %p108
      %p110 = scmp.ne.s32.totalorder %s101, %s102
      %p111 = scmp.eq.s32.totalorder %s18, 0
      %p112 = por %p110, %p111
      %p113 = scmp.ne.s32.totalorder %s101, %s102
      %p114 = scmp.eq.s32.totalorder %s19, 3
      %p115 = por %p113, %p114
      %p117 = scmp.ne.s32.totalorder %s102, %s116
      %p118 = scmp.eq.s32.totalorder %s19, 0
      %p119 = por %p117, %p118
      %s120 = ssub.s32 %s13, %s20
      %p121 = scmp.eq.s32.totalorder %s120, 0
      %s123 = sadd.s32 %s122, 1
      %s124 = scalar_select %p121, %s122, %s123
      %p127 = pneg %p121
      %p128 = scmp.eq.s32.totalorder %s13, 3
      %p129 = por %p127, %p128
      %p130 = scmp.ne.s32.totalorder %s122, %s125
      %p131 = scmp.eq.s32.totalorder %s13, 0
      %p132 = por %p130, %p131
      %p133 = scmp.ne.s32.totalorder %s122, %s125
      %p134 = scmp.eq.s32.totalorder %s18, 3
      %p135 = por %p133, %p134
      %p136 = scmp.ne.s32.totalorder %s125, %s126
      %p137 = scmp.eq.s32.totalorder %s18, 0
      %p138 = por %p136, %p137
      %p139 = scmp.ne.s32.totalorder %s125, %s126
      %p140 = scmp.eq.s32.totalorder %s19, 3
      %p141 = por %p139, %p140
      %p143 = scmp.ne.s32.totalorder %s126, %s142
      %p144 = scmp.eq.s32.totalorder %s19, 0
      %p145 = por %p143, %p144
      %p146 = scmp.le.s32.totalorder 1, %s13
      %p147 = scmp.lt.s32.totalorder %s13, 5
      %p148 = pnand %p146, %p147
      %p149 = pneg %p148
      // Predicated region
      $region9: #{tpu_custom_call.1} parent=5 // pred_check
        _
      $region10: #{tpu_custom_call.1} parent=5 // pred_check_branch
        %151 = sbr.rel (%p148) target = $region12
      $region11: #{tpu_custom_call.1} parent=5 // pred_region
        %s152 = ssub.s32 %s13, 1
        // Predicated region
        $region13: #{tpu_custom_call.1} parent=11 // pred_check
          %p153 = pneg %p112
        $region14: #{tpu_custom_call.1} parent=11 // pred_check_branch
          %155 = sbr.rel (%p153) target = $region16
        $region15: #{tpu_custom_call.1} parent=11 // pred_region
          _
        $region16: #{tpu_custom_call.1} parent=11 // pred_fallthru
          _
      $region12: #{tpu_custom_call.1} parent=5 // pred_fallthru
        _
      %p156 = scmp.lt.s32.totalorder %s13, 4
      // Predicated region
      $region17: #{tpu_custom_call.1} parent=5 // pred_check
        %p157 = pneg %p156
      $region18: #{tpu_custom_call.1} parent=5 // pred_check_branch
        %159 = sbr.rel (%p157) target = $region20
      $region19: #{tpu_custom_call.1} parent=5 // pred_region
        // Predicated region
        $region21: #{tpu_custom_call.1} parent=19 // pred_check
          %p160 = pneg %p33
        $region22: #{tpu_custom_call.1} parent=19 // pred_check_branch
          %162 = sbr.rel (%p160) target = $region24
        $region23: #{tpu_custom_call.1} parent=19 // pred_region
          %s163 = smul.u32 2, %s13
          %p164 = scmp.lt.s32.totalorder %s163, 7
          %s165 = scalar_select %p164, %s163, 7
          %s166 = smul.addr %s165, 8
          %s167 = scalar_lea.vmem %s0, %s166
          %s168 = smul.u32 2, %s13
        $region24: #{tpu_custom_call.1} parent=19 // pred_fallthru
          _
        // Predicated region
        $region25: #{tpu_custom_call.1} parent=19 // pred_check
          %p169 = pneg %p59
        $region26: #{tpu_custom_call.1} parent=19 // pred_check_branch
          %171 = sbr.rel (%p169) target = $region28
        $region27: #{tpu_custom_call.1} parent=19 // pred_region
          %s172 = smul.u32 2, %s13
          %p173 = scmp.lt.s32.totalorder %s172, 7
          %s174 = scalar_select %p173, %s172, 7
          %s175 = smul.addr %s174, 8
          %s176 = scalar_lea.vmem %s1, %s175
          %s177 = smul.u32 2, %s13
        $region28: #{tpu_custom_call.1} parent=19 // pred_fallthru
          _
        // Predicated region
        $region29: #{tpu_custom_call.1} parent=19 // pred_check
          %p178 = pneg %p85
        $region30: #{tpu_custom_call.1} parent=19 // pred_check_branch
          %180 = sbr.rel (%p178) target = $region32
        $region31: #{tpu_custom_call.1} parent=19 // pred_region
          %s181 = smul.u32 2, %s13
          %p182 = scmp.lt.s32.totalorder %s181, 7
          %s183 = scalar_select %p182, %s181, 7
          %s184 = smul.addr %s183, 8
          %s185 = scalar_lea.vmem %s2, %s184
          %s186 = smul.u32 2, %s13
        $region32: #{tpu_custom_call.1} parent=19 // pred_fallthru
          _
      $region20: #{tpu_custom_call.1} parent=5 // pred_fallthru
        _
      %p187 = scmp.le.s32.totalorder 1, %s13
      %p188 = scmp.lt.s32.totalorder %s13, 5
      %p189 = pnand %p187, %p188
      %p190 = pneg %p189
      // Predicated region
      $region33: #{tpu_custom_call.1} parent=5 // pred_check
        _
      $region34: #{tpu_custom_call.1} parent=5 // pred_check_branch
        %192 = sbr.rel (%p189) target = $region36
      $region35: #{tpu_custom_call.1} parent=5 // pred_region
        %s193 = ssub.s32 %s13, 1
        %s194 = smul.u32 2, %s18
        %p195 = scmp.lt.s32.totalorder %s194, 7
        %s196 = scalar_select %p195, %s194, 7
        %s197 = smul.addr %s196, 8
        %s198 = scalar_lea.vmem %s0, %s197
        %p199 = pneg %p39
        %p200 = pneg %p36
        %s201 = smul.u32 2, %s18
        %p202 = scmp.lt.s32.totalorder %s201, 7
        %s203 = scalar_select %p202, %s201, 7
        %s204 = smul.addr %s203, 8
        %s205 = scalar_lea.vmem %s1, %s204
        %p206 = pneg %p65
        %p207 = pneg %p62
        %s208 = smul.u32 2, %s18
        %p209 = scmp.lt.s32.totalorder %s208, 7
        %s210 = scalar_select %p209, %s208, 7
        %s211 = smul.addr %s210, 8
        %s212 = scalar_lea.vmem %s2, %s211
        %p213 = pneg %p91
        %p214 = pneg %p88
        %p215 = pneg %p112
        %p216 = pneg %p109
        %p217 = pneg %p138
        %p218 = pneg %p135
        %s219 = sand.u32 %s125, 1
        %s220 = scalar_lea.sflag [#allocation3], %s219
        %s221 = sand.u32 %s125, 1
        %s222 = smul.addr %s221, 8
        %s223 = scalar_lea.vmem [#allocation2], %s222
        %s224 = smul.u32 2, %s18
        %p225 = scmp.lt.s32.totalorder %s224, 7
        %s226 = scalar_select %p225, %s224, 7
        %s227 = smul.addr %s226, 8
        %s228 = scalar_lea.vmem %s0, %s227
        %s229 = smul.u32 2, %s18
        %s230 = smul.u32 2, %s18
        %p231 = scmp.lt.s32.totalorder %s230, 7
        %s232 = scalar_select %p231, %s230, 7
        %s233 = smul.addr %s232, 8
        %s234 = scalar_lea.vmem %s1, %s233
        %s235 = smul.u32 2, %s18
        %s236 = smul.u32 2, %s18
        %p237 = scmp.lt.s32.totalorder %s236, 7
        %s238 = scalar_select %p237, %s236, 7
        %s239 = smul.addr %s238, 8
        %s240 = scalar_lea.vmem %s2, %s239
        %s241 = smul.u32 2, %s18
        %s242 = smul.u32 %s18, 16
        %v243 = vlaneseq
        %v244 = vshrl.u32 %v243, 7
        %v245 = vadd.s32 %v244, 8
        %v246 = vstv %s242
        %v247 = vadd.s32 %v246, %v244
        %v248 = vadd.s32 %v246, %v245
        %vm249 = vcmp.lt.s32.totalorder %v247, 60
        %vm250 = vcmp.lt.s32.totalorder %v248, 60
        %v251 = vld [vmem:[%s228] sm:$0xff]
        %v252 = vld [vmem:[%s228 + $0x8] sm:$0xff]
        %v253 = vsel %vm249, 1, 0
        %v254 = vsel %vm250, 1, 0
        %vm255 = vcmp.eq.s32.totalorder %v253, 1
        %vm256 = vcmp.eq.s32.totalorder %v254, 1
        %v257 = vsel %vm255, %v251, 0.0
        %v258 = vsel %vm256, %v252, 0.0
        %v259 = vld [vmem:[%s240] sm:$0xff]
        %v260 = vld [vmem:[%s240 + $0x8] sm:$0xff]
        %v261 = vsel %vm255, %v259, 0.0
        %v262 = vsel %vm256, %v260, 0.0
        %v263 = vld [vmem:[%s234] sm:$0xff]
        %v264 = vld [vmem:[%s234 + $0x8] sm:$0xff]
        %v265 = vsel %vm249, %v263, 0
        %v266 = vsel %vm250, %v264, 0
        %v267 = vld [vmem:[%s3] sm:$0xff]
        %v268 = vld [vmem:[%s3 + $0x8] sm:$0x3]
        %v269 = vlaneseq
        %v270 = vand.u32 %v269, 127
        %271 = vset.pattern.permute.xlu0 0
        %272 = vperm.xlu0 %271, %v265
        %v273 = vpop.permute.xlu0 %272
        %274 = vset.pattern.permute.xlu0 0
        %275 = vperm.xlu0 %274, %v266
        %v276 = vpop.permute.xlu0 %275
        %vm277 = vcmp.eq.s32.totalorder %v270, %v273
        %vm278 = vcmp.eq.s32.totalorder %v270, %v276
        %v279 = vsel %vm277, 1, 0
        %v280 = vsel %vm278, 1, 0
        %v281 = vcvt.s32.f32 %v279
        %v282 = vcvt.s32.f32 %v280
        %vm283 = vcmask 80896
        %v284 = vsel %vm283, %v257, -inf
        %285 = vmax.xlane.f32.xlu0 %v284
        %v286 = vpop.xlane.xlu0 %285
        %v287 = vsel %vm283, %v258, -inf
        %288 = vmax.xlane.f32.xlu0 %v287
        %v289 = vpop.xlane.xlu0 %288
        %v290 = vsub.f32 %v257, %v286
        %v291 = vsub.f32 %v258, %v289
        %v292 = vmul.f32 %v290, 1.442695
        %v293 = vpow.pop %v292
        %v294 = vmul.f32 %v291, 1.442695
        %v295 = vpow.pop %v294
        %v296 = vsel %vm283, %v293, 0.0
        %297 = vadd.xlane.f32.xlu0 %v296
        %v298 = vpop.xlane.xlu0 %297
        %v299 = vsel %vm283, %v295, 0.0
        %300 = vadd.xlane.f32.xlu0 %v299
        %v301 = vpop.xlane.xlu0 %300
        %v302 = vlog2.pop %v298
        %v303 = vmul.f32 %v302, 0.6931472
        %v304 = vlog2.pop %v301
        %v305 = vmul.f32 %v304, 0.6931472
        %v306 = vadd.f32 %v286, %v303
        %v307 = vadd.f32 %v289, %v305
        %v308 = vmul.f32 %v257, %v281
        %v309 = vmul.f32 %v258, %v282
        %v310 = vsel %vm283, %v308, 0.0
        %311 = vadd.xlane.f32.xlu0 %v310
        %v312 = vpop.xlane.xlu0 %311
        %v313 = vsel %vm283, %v309, 0.0
        %314 = vadd.xlane.f32.xlu0 %v313
        %v315 = vpop.xlane.xlu0 %314
        %v316 = vsub.f32 %v306, %v312
        %v317 = vsub.f32 %v307, %v315
        %v319 = vsel %vm283, %v281, 0
        %v322 = vsel %vm283, %v282, 0
        %vm324 = vcmask 1041408
        %v326 = vsel %vm324, %v268, 0
        %328 = vmatpush.msra.mxu0 0.0
        %329 = vmatpush.msra.mxu0 0.0
        %330 = vmatpush.msra.mxu0 0.0
        %331 = vmatpush.msra.mxu0 0.0
        %332 = vmatpush.msra.mxu0 0.0
        %333 = vmatpush.msra.mxu0 0.0
        %334 = vmatpush.msra.mxu0 0.0
        %335 = vmatpush.msra.mxu0 0.0
        %336 = vmatpush.msra.mxu0 0.0
        %337 = vmatpush.msra.mxu0 0.0
        %338 = vmatpush.msra.mxu0 0.0
        %339 = vmatpush.msra.mxu0 0.0
        %340 = vmatpush.msra.mxu0 0.0
        %341 = vmatpush.msra.mxu0 0.0
        %342 = vmatpush.msra.mxu0 %v326
        %343 = vmatpush.msra.mxu0 %v267
        %344 = vmatmul.f32.gmra.mxu0 %v319
        %v345 = vpop.f32.mrf.mxu0
        %v346 = vadd.f32 0.0, %v345
        %347 = vmatmul.f32.gmra.mxu0 %v322
        %v348 = vpop.f32.mrf.mxu0
        %v349 = vadd.f32 0.0, %v348
        %350 = vdwg.mxu0
        %v351 = vsub.f32 %v261, %v346
        %v352 = vsub.f32 %v262, %v349
        %v353 = vmul.f32 %v351, %v351
        %v354 = vmul.f32 %v352, %v352
        %vm355 = vcmask 261120
        %v356 = vsel %vm355, %v353, 0.0
        %357 = vadd.xlane.f32.xlu0 %v356
        %v358 = vpop.xlane.xlu0 %357
        %v359 = vsel %vm355, %v354, 0.0
        %360 = vadd.xlane.f32.xlu0 %v359
        %v361 = vpop.xlane.xlu0 %360
        %v362 = vcvt.s32.f32 %v253
        %v363 = vcvt.s32.f32 %v254
        %v364 = vmul.f32 %v358, 0.005
        %v365 = vmul.f32 %v361, 0.005
        %v366 = vadd.f32 %v316, %v364
        %v367 = vadd.f32 %v317, %v365
        %v368 = vmul.f32 %v366, %v362
        %v369 = vmul.f32 %v367, %v363
        %vm370 = vcmask 7168
        %v371 = vsel %vm370, %v368, 0.0
        %v372 = vsel %vm370, %v369, 0.0
        %v373 = vadd.f32 %v371, %v372
        %374 = vadd.xlane.f32.xlu0 %v373
        %v375 = vpop.xlane.xlu0 %374
        %v376 = vrot.slane %v375, 4
        %v377 = vadd.f32 %v375, %v376
        %v378 = vrot.slane %v377, 2
        %v379 = vadd.f32 %v377, %v378
        %v380 = vrot.slane %v379, 1
        %v381 = vadd.f32 %v379, %v380
        %s382 = vtos %v381
        %s383 = smul.f32 %s382, 0.016666668
        %vm384 = vcmp.eq.s32.totalorder %v244, 0
        %vm385 = vcmp.eq.s32.totalorder %v270, 0
        %vm386 = vmand %vm384, %vm385
        %v387 = vstv %s383
        %v388 = vsel %vm386, %v387, 0.0
        %389 = vst [vmem:[%s223] sm:$0xff] %v388
        %p390 = scmp.eq.s32.totalorder %s18, 0
        // Predicated region
        $region37: #{tpu_custom_call.1} parent=35 // pred_check
          %p391 = pneg %p390
        $region38: #{tpu_custom_call.1} parent=35 // pred_check_branch
          %393 = sbr.rel (%p391) target = $region40
        $region39: #{tpu_custom_call.1} parent=35 // pred_region
          %v394 = vmul.f32 %v267, %v267
          %v395 = vmul.f32 %v268, %v268
          %v396 = vsel %vm355, %v394, 0.0
          %397 = vadd.xlane.f32.xlu0 %v396
          %v398 = vpop.xlane.xlu0 %397
          %vm399 = vcmask 254976
          %v400 = vsel %vm399, %v395, 0.0
          %401 = vadd.xlane.f32.xlu0 %v400
          %v402 = vpop.xlane.xlu0 %401
          %v403 = vadd.f32 %v398, 1e-12
          %v404 = vadd.f32 %v402, 1e-12
          %v405 = vrsqrt.pop %v403
          %v406 = vmul.f32 %v405, %v403
          %v407 = vmul.f32 %v406, %v405
          %v408 = vmul.f32 0.5, %v407
          %v409 = vsub.f32 1.5, %v408
          %v410 = vmul.f32 %v405, %v409
          %vm411 = vweird.f32 %v403
          %vm412 = vweird.f32 %v405
          %vm413 = vmor %vm411, %vm412
          %v414 = vsel %vm413, %v405, %v410
          %v415 = vrsqrt.pop %v404
          %v416 = vmul.f32 %v415, %v404
          %v417 = vmul.f32 %v416, %v415
          %v418 = vmul.f32 0.5, %v417
          %v419 = vsub.f32 1.5, %v418
          %v420 = vmul.f32 %v415, %v419
          %vm421 = vweird.f32 %v404
          %vm422 = vweird.f32 %v415
          %vm423 = vmor %vm421, %vm422
          %v424 = vsel %vm423, %v415, %v420
          %v425 = vmul.f32 %v267, %v414
          %v426 = vmul.f32 %v268, %v424
          %v428 = vsel %vm355, %v425, 0
          %v431 = vsel %vm355, %v426, 0
          %433 = vmatpush.xpose.msra.mxu0 0.0
          %434 = vmatpush.xpose.msra.mxu0 0.0
          %435 = vmatpush.xpose.msra.mxu0 0.0
          %436 = vmatpush.xpose.msra.mxu0 0.0
          %437 = vmatpush.xpose.msra.mxu0 0.0
          %438 = vmatpush.xpose.msra.mxu0 0.0
          %439 = vmatpush.xpose.msra.mxu0 0.0
          %440 = vmatpush.xpose.msra.mxu0 0.0
          %441 = vmatpush.xpose.msra.mxu0 0.0
          %442 = vmatpush.xpose.msra.mxu0 0.0
          %443 = vmatpush.xpose.msra.mxu0 0.0
          %444 = vmatpush.xpose.msra.mxu0 0.0
          %445 = vmatpush.xpose.msra.mxu0 0.0
          %446 = vmatpush.xpose.msra.mxu0 0.0
          %447 = vmatpush.xpose.msra.mxu0 %v431
          %448 = vmatpush.xpose.msra.mxu0 %v428
          %449 = vmatmul.f32.gmra.mxu0 %v428
          %v450 = vpop.f32.mrf.mxu0
          %v451 = vadd.f32 0.0, %v450
          %452 = vmatmul.f32.gmra.mxu0 %v431
          %v453 = vpop.f32.mrf.mxu0
          %v454 = vadd.f32 0.0, %v453
          %455 = vdwg.mxu0
          %v456 = vsel %vm283, %v451, 0.0
          %vm457 = vcmask 74752
          %v458 = vsel %vm457, %v454, 0.0
          %v459 = vadd.f32 %v456, %v458
          %460 = vadd.xlane.f32.xlu0 %v459
          %v461 = vpop.xlane.xlu0 %460
          %v462 = vrot.slane %v461, 4
          %v463 = vadd.f32 %v461, %v462
          %v464 = vrot.slane %v463, 2
          %v465 = vadd.f32 %v463, %v464
          %v466 = vrot.slane %v465, 1
          %v467 = vadd.f32 %v465, %v466
          %s468 = vtos %v467
          %s469 = sadd.f32 %s468, 80.0
          %s470 = smul.f32 %s469, 0.01
          %s471 = sadd.f32 %s383, %s470
          %v472 = vstv %s471
          %v473 = vsel %vm386, %v472, 0.0
          %474 = vst [vmem:[%s223] sm:$0xff] %v473
        $region40: #{tpu_custom_call.1} parent=35 // pred_fallthru
          _
        %s475 = sand.u32 %s125, 1
        %s476 = scalar_lea.sflag [#allocation3], %s475
        %s477 = sand.u32 %s125, 1
        %s478 = smul.addr %s477, 8
        %s479 = scalar_lea.vmem [#allocation2], %s478
        // Predicated region
        $region41: #{tpu_custom_call.1} parent=35 // pred_check
          %p480 = pneg %p135
        $region42: #{tpu_custom_call.1} parent=35 // pred_check_branch
          %482 = sbr.rel (%p480) target = $region44
        $region43: #{tpu_custom_call.1} parent=35 // pred_region
          %484 = vsyncadd %s476, 0
          %s485 = smul.addr %s18, 8
          %s486 = scalar_lea.hbm %s4, %s485
          %s488 = sshll.u32 %s479, 4
          %s489 = int_to_ptr.vmem [resolvable:$true] %s488
          %s490 = sshll.u32 %s486, 4
          %s491 = int_to_ptr.hbm [resolvable:$true] %s490
          %493 = dma.vmem_to_hbm [thread:$0]  %s489, 128, %s491, %s476
        $region44: #{tpu_custom_call.1} parent=35 // pred_fallthru
          _
      $region36: #{tpu_custom_call.1} parent=5 // pred_fallthru
        _
      %p494 = scmp.le.s32.totalorder 2, %s13
      // Predicated region
      $region45: #{tpu_custom_call.1} parent=5 // pred_check
        %p495 = pneg %p494
      $region46: #{tpu_custom_call.1} parent=5 // pred_check_branch
        %497 = sbr.rel (%p495) target = $region48
      $region47: #{tpu_custom_call.1} parent=5 // pred_region
        %s498 = ssub.s32 %s13, 2
        // Predicated region
        $region49: #{tpu_custom_call.1} parent=47 // pred_check
          %p499 = pneg %p141
        $region50: #{tpu_custom_call.1} parent=47 // pred_check_branch
          %501 = sbr.rel (%p499) target = $region52
        $region51: #{tpu_custom_call.1} parent=47 // pred_region
          %s502 = sand.u32 %s126, 1
          %s503 = scalar_lea.sflag [#allocation3], %s502
          %s504 = sand.u32 %s126, 1
          %s505 = smul.addr %s504, 8
          %s506 = scalar_lea.vmem [#allocation2], %s505
          %508 = dma.done %s503, 128
        $region52: #{tpu_custom_call.1} parent=47 // pred_fallthru
          _
      $region48: #{tpu_custom_call.1} parent=5 // pred_fallthru
        _
    $region6: #{tpu_custom_call.1} parent=1 // loop_footer
      %s17 = sadd.s32 1, %s13
    $region7: #{tpu_custom_call.1} parent=1 // loop_footer_branch
      %12 = sbr.rel target = $region3
    $region8: #{tpu_custom_call.1} parent=1 // loop_exit
      _
    %509 = vsyncpa [#allocation3], 1
    %s510 = scalar_lea.sflag [#allocation3], 1
    %511 = vsyncpa %s510, 1

</llo_original>
